<compile_context>
chip_gen: v7x
topology: tpu7x:2x2x1
jax: 0.10.0
libtpu: 0.0.40
codegen_flags: <defaults>
</compile_context>

<pallas_src>
import jax
import jax.numpy as jnp
import numpy as np
from jax.experimental import pallas as pl
from jax.experimental.pallas import tpu as pltpu

D_MODEL = 384          # ROPE(d_model=384)
ROPE_BASE = 1000.0
TIME_SCALE = 1.0


# ---------------------------------------------------------------------------
# Glue: ROPE cos/sin table from timestamps (mirrors ROPE._register_cache / the
# "compute" branch of ROPE.forward).  Tiny [N, H] transcendental table in XLA.
# ---------------------------------------------------------------------------
def rope_cos_sin(timestamps, time_norm=True):
    t = timestamps
    if t.ndim < 2:
        t = t[:, None]                                   # [N, 1]  (unsqueeze(1))
    t = t.astype(jnp.float32)
    if time_norm:
        t = jnp.clip(t - t.min(), 1e-8, None) / (t.max() - t.min() + 1e-8) * TIME_SCALE
    else:
        t = jnp.clip(t - t.min(), 1e-8, None)
    inv_freq = 1.0 / (ROPE_BASE ** (jnp.arange(0, D_MODEL, 2, dtype=jnp.float32) / D_MODEL))
    freqs = t[..., None] * inv_freq                      # einsum('bs,d->bsd') -> [N,1,192]
    emb = jnp.concatenate([freqs, freqs], axis=-1)       # [N,1,384]
    emb = jnp.squeeze(emb, axis=1)                       # [N,384]
    return jnp.cos(emb), jnp.sin(emb)


# ---------------------------------------------------------------------------
# Pallas kernel: masked-sum accumulation over seq blocks, then (on the last seq
# step) rotate-half RoPE mix and L2 normalization.  The 1/count of mean-pooling
# is dropped (cancelled by the L2 norm).
# ---------------------------------------------------------------------------
def mpnet_head_kernel(nblk_ref, emb_ref, len_ref, cos_ref, sin_ref, out_ref, acc_ref):
    i = pl.program_id(0)
    s = pl.program_id(1)
    tn_, ts_ = emb_ref.shape[0], emb_ref.shape[1]

    @pl.when(s == 0)
    def _init():
        acc_ref[...] = jnp.zeros_like(acc_ref)

    # Skip seq blocks that are entirely padding for this batch tile (their block
    # index is also clamped in the index_map, so they are never re-DMA'd).
    @pl.when(s < nblk_ref[i])
    def _accumulate():
        emb = emb_ref[...]                                           # (tn, ts, H) native dtype
        tok = s * ts_ + jax.lax.broadcasted_iota(jnp.int32, (tn_, ts_, 1), 1)
        # Prefix mask rebuilt in-kernel (len_ref is (tn,1,1) int32 token counts).
        mask = (tok < len_ref[...]).astype(emb.dtype)                # exact 0/1 in bf16
        acc_ref[...] += jnp.sum((emb * mask).astype(jnp.float32), axis=1)

    @pl.when(s == pl.num_programs(1) - 1)
    def _finalize():
        pooled = acc_ref[...]             # un-normalized masked sum; mean-pooling's
        h = pooled.shape[-1]              # 1/count cancels under the final L2 norm.

        # rotate_half(x) = cat(-x2, x1): roll by h/2 on the XLU; the sign flip is
        # folded into sin_ref (sin_signed) by the wrapper.
        rotated = pltpu.roll(pooled, shift=h // 2, axis=1)

        # ROPE mix (dropout p=0.0 -> identity)
        x_rot = pooled * cos_ref[...] + rotated * sin_ref[...]

        # F.normalize(x, p=2, dim=1), eps=1e-12  ->  rsqrt(max(|x|^2, 1e-24)) on EUP.
        sq = jnp.maximum(jnp.sum(x_rot * x_rot, axis=-1, keepdims=True), 1e-24)
        out_ref[...] = (x_rot * jax.lax.rsqrt(sq)).astype(out_ref.dtype)


# ---------------------------------------------------------------------------
# Wrapper: tiling / padding / VMEM budgeting + pallas_call.
# ---------------------------------------------------------------------------
def _round_up(x, m):
    return ((x + m - 1) // m) * m


def _vmem_budget():
    """(embedding-block byte target, vmem_limit cap) per TPU generation."""
    phys = 64 << 20                       # conservative default (v7x-safe)
    try:
        phys = int(getattr(pltpu.get_tpu_info(), "vmem_capacity_bytes", phys))
    except Exception:
        pass
    if phys >= (96 << 20):                # v5e / v6e: 128 MiB physical VMEM
        return 16 << 20, 100 << 20
    return 8 << 20, 56 << 20              # v7x: 64 MiB physical (32 MiB default scoped)


def mpnet_head(token_embeddings, attention_mask, cos, sin, *, tn=None, ts=None,
               emb_block_bytes=None, vmem_limit_bytes=None):
    N, S, H = token_embeddings.shape
    assert H % 128 == 0
    itemsize = jnp.dtype(token_embeddings.dtype).itemsize
    sub = 16 if itemsize == 2 else 8                      # bf16 packs 16 sublanes / vreg

    default_block, vmem_cap = _vmem_budget()
    if emb_block_bytes is None:
        emb_block_bytes = default_block

    # Seq tile: multiple of the sublane packing, capped so ragged-batch skipping
    # has granularity; S is padded up to a multiple of ts.
    if ts is None:
        ts = min(_round_up(S, sub), 512)
    assert ts % sub == 0, "seq tile must be a multiple of the sublane packing"
    Sp = _round_up(S, ts)

    # Batch tile: hit the per-generation embedding-block byte target, but keep
    # >= 2 batch grid steps when the batch allows it (v7x dual-TC sharding).
    if tn is None:
        cap = max(8, (emb_block_bytes // max(1, ts * H * itemsize)) // 8 * 8)
        n8 = _round_up(N, 8)
        tn = min(cap, n8)
        if n8 // tn < 2 and n8 >= 16:
            tn = max(8, _round_up(n8 // 2, 8))
    assert tn % 8 == 0
    Np = _round_up(N, tn)

    num_bt = Np // tn
    nsb = Sp // ts

    # Wrapper-side (free XLA) precompute ------------------------------------
    # Prefix-mask token counts (the HF tokenizer's attention_mask is a prefix
    # mask).  TODO(synk): if a non-prefix mask is ever needed, fall back to
    # streaming the [N,S,1] mask instead of lengths.
    lengths = jnp.sum((attention_mask > 0).astype(jnp.int32), axis=1)        # (N,)
    lengths = jnp.pad(lengths, (0, Np - N))                                   # padded rows: 0 tokens
    len3 = lengths.reshape(Np, 1, 1).astype(jnp.int32)

    # Per-batch-tile number of non-empty seq blocks (scalar-prefetched to SMEM).
    tile_max = jnp.max(lengths.reshape(num_bt, tn), axis=1)
    nblk = jnp.clip((tile_max + ts - 1) // ts, 1, nsb).astype(jnp.int32)      # (num_bt,)

    emb_p = jnp.pad(token_embeddings, ((0, Np - N), (0, Sp - S), (0, 0)))
    lane = jnp.arange(H, dtype=jnp.int32)[None, :]
    sin_signed = jnp.where(lane < H // 2, -sin, sin).astype(jnp.float32)      # fold rotate_half sign
    cos_p = jnp.pad(cos.astype(jnp.float32), ((0, Np - N), (0, 0)))
    sin_p = jnp.pad(sin_signed, ((0, Np - N), (0, 0)))

    # Explicit scoped-VMEM limit (v5e default is only 16 MiB); capped per gen.
    if vmem_limit_bytes is None:
        emb_block = tn * ts * H * itemsize
        est = (2 * emb_block            # double-buffered embedding block
               + tn * ts * H * 4        # possible f32 temporary for the masked reduce
               + 8 * tn * H * 4         # cos/sin/out (double-buffered) + accumulator
               + (2 << 20))             # lengths / semaphores / slack
        vmem_limit_bytes = int(min(vmem_cap, max(32 << 20, 2 * est)))

    out = pl.pallas_call(
        mpnet_head_kernel,
        out_shape=jax.ShapeDtypeStruct((Np, H), jnp.float32),
        grid_spec=pltpu.PrefetchScalarGridSpec(
            num_scalar_prefetch=1,                         # nblk -> SMEM
            grid=(num_bt, nsb),
            in_specs=[
                # token embeddings: clamp seq block to the last non-empty one
                pl.BlockSpec((tn, ts, H),
                             lambda i, s, nb: (i, jnp.minimum(s, nb[i] - 1), 0)),
                pl.BlockSpec((tn, 1, 1), lambda i, s, nb: (i, 0, 0)),   # token counts
                pl.BlockSpec((tn, H), lambda i, s, nb: (i, 0)),         # cos
                pl.BlockSpec((tn, H), lambda i, s, nb: (i, 0)),         # sin (sign-folded)
            ],
            out_specs=pl.BlockSpec((tn, H), lambda i, s, nb: (i, 0)),
            scratch_shapes=[pltpu.VMEM((tn, H), jnp.float32)],          # pooled-sum accumulator
        ),
        compiler_params=pltpu.CompilerParams(
            dimension_semantics=("parallel", "arbitrary"),
            vmem_limit_bytes=vmem_limit_bytes),
    )(nblk, emb_p, len3, cos_p, sin_p)
    return out[:N]


# ---------------------------------------------------------------------------
# Pure-JAX reference for verification (faithful to the PyTorch forward).
# ---------------------------------------------------------------------------
def reference(token_embeddings, attention_mask, timestamps):
    mask = attention_mask[..., None].astype(jnp.float32)
    pooled = jnp.sum(token_embeddings * mask, axis=1) / jnp.maximum(
        jnp.sum(mask, axis=1), 1e-9)
    cos, sin = rope_cos_sin(timestamps)
    h = pooled.shape[-1]
    x1, x2 = pooled[:, : h // 2], pooled[:, h // 2:]
    rot = jnp.concatenate([-x2, x1], axis=-1)
    x_rot = pooled * cos + rot * sin
    nrm = jnp.maximum(jnp.linalg.norm(x_rot, axis=1, keepdims=True), 1e-12)
    return x_rot / nrm


if __name__ == "__main__":
    key = jax.random.PRNGKey(0)
    k_emb, k_len, k_ts = jax.random.split(key, 3)

    N, S, H = 16, 16, D_MODEL   # 16 sentences, 16 tokens, hidden = 384 (ROPE d_model)

    # TODO(synk): HF tokenizer + pretrained MiniLM-L12-v2 encoder with PEFT/LoRA need an
    # external checkpoint; stand in its output with deterministic synthetic embeddings.
    token_embeddings = jax.random.normal(k_emb, (N, S, H), dtype=jnp.float32)
    lengths = jax.random.randint(k_len, (N,), 4, S + 1)
    attention_mask = (jnp.arange(S)[None, :] < lengths[:, None]).astype(jnp.float32)
    timestamps = jax.random.uniform(k_ts, (N,), minval=0.0, maxval=1000.0)

    cos, sin = rope_cos_sin(timestamps)
    ref = reference(token_embeddings, attention_mask, timestamps)

    # f32 run, explicit small tiles: grid (2, 2) exercises accumulator init/finalize
    # and the padded-seq-tile skip (rows with < 8 tokens skip their 2nd seq block).
    out_f32 = jax.block_until_ready(
        mpnet_head(token_embeddings, attention_mask, cos, sin, tn=8, ts=8))
    np.testing.assert_allclose(np.asarray(out_f32), np.asarray(ref), rtol=1e-5, atol=1e-5)

    # bf16 embeddings (halves dominant DMA; f32 accumulation inside) + a batch size
    # that is not a multiple of 8, exercising the padding + auto tile-selection path.
    Nb = 13
    emb_bf16 = token_embeddings[:Nb].astype(jnp.bfloat16)
    cos_b, sin_b = rope_cos_sin(timestamps[:Nb])
    ref_b = reference(emb_bf16.astype(jnp.float32), attention_mask[:Nb], timestamps[:Nb])
    out_b = jax.block_until_ready(
        mpnet_head(emb_bf16, attention_mask[:Nb], cos_b, sin_b))
    np.testing.assert_allclose(np.asarray(out_b), np.asarray(ref_b), rtol=1e-4, atol=1e-4)

    print("KERNEL_OK")
</pallas_src>

<mosaic_0001>
module attributes {stable_mosaic.version = 11 : i64} {
  func.func @mpnet_head_kernel(%arg0: i32, %arg1: i32, %arg2: memref<2xi32, #tpu.memory_space<smem>>, %arg3: memref<8x8x384xf32, #tpu.memory_space<vmem>>, %arg4: memref<8x1x1xi32, #tpu.memory_space<vmem>>, %arg5: memref<8x384xf32, #tpu.memory_space<vmem>>, %arg6: memref<8x384xf32, #tpu.memory_space<vmem>>, %arg7: memref<8x384xf32, #tpu.memory_space<vmem>>, %arg8: memref<8x384xf32, #tpu.memory_space<vmem>>) attributes {dimension_semantics = [#tpu.dimension_semantics<parallel>, #tpu.dimension_semantics<arbitrary>], iteration_bounds = array<i64: 2, 2>, scalar_prefetch = 1 : i64, scratch_operands = 1 : i64, tpu.core_type = #tpu.core_type<tc>, window_params = [{transform_indices = @transform_0, window_bounds = array<i64: 8, 8, 384>}, {transform_indices = @transform_1, window_bounds = array<i64: 8, 1, 1>}, {transform_indices = @transform_2, window_bounds = array<i64: 8, 384>}, {transform_indices = @transform_3, window_bounds = array<i64: 8, 384>}, {transform_indices = @transform_4, window_bounds = array<i64: 8, 384>}]} {
    %c0_i32 = arith.constant 0 : i32
    %0 = arith.cmpi eq, %arg1, %c0_i32 : i32
    %1 = arith.extui %0 : i1 to i32
    %c0_i32_0 = arith.constant 0 : i32
    %2 = arith.cmpi ne, %1, %c0_i32_0 : i32
    scf.if %2 {
      %cst = arith.constant 0.000000e+00 : f32
      %11 = vector.broadcast %cst : f32 to vector<8x384xf32>
      %c0 = arith.constant 0 : index
      %c0_3 = arith.constant 0 : index
      %12 = vector.load %arg8[%c0, %c0_3] : memref<8x384xf32, #tpu.memory_space<vmem>>, vector<8x384xf32>
      tpu.vector_store %arg8[%c0, %c0_3], %11 {strides = array<i32>} : memref<8x384xf32, #tpu.memory_space<vmem>>, vector<8x384xf32>,
    } else {
    }
    %3 = arith.index_cast %arg0 : i32 to index
    %4 = memref.load %arg2[%3] : memref<2xi32, #tpu.memory_space<smem>>
    %5 = arith.cmpi slt, %arg1, %4 : i32
    %6 = arith.extui %5 : i1 to i32
    %c0_i32_1 = arith.constant 0 : i32
    %7 = arith.cmpi ne, %6, %c0_i32_1 : i32
    scf.if %7 {
      %c0 = arith.constant 0 : index
      %c0_3 = arith.constant 0 : index
      %c0_4 = arith.constant 0 : index
      %11 = vector.load %arg3[%c0, %c0_3, %c0_4] : memref<8x8x384xf32, #tpu.memory_space<vmem>>, vector<8x8x384xf32>
      %c8_i32 = arith.constant 8 : i32
      %12 = arith.muli %arg1, %c8_i32 : i32
      %13 = tpu.iota {dimensions = array<i32: 1>} : vector<8x8x1xi32>
      %14 = vector.broadcast %12 : i32 to vector<8x8x1xi32>
      %15 = arith.addi %14, %13 : vector<8x8x1xi32>
      %c0_5 = arith.constant 0 : index
      %c0_6 = arith.constant 0 : index
      %c0_7 = arith.constant 0 : index
      %16 = vector.load %arg4[%c0_5, %c0_6, %c0_7] : memref<8x1x1xi32, #tpu.memory_space<vmem>>, vector<8x1x1xi32>
      %17 = vector.broadcast %16 : vector<8x1x1xi32> to vector<8x8x1xi32>
      %18 = arith.cmpi slt, %15, %17 : vector<8x8x1xi32>
      %19 = arith.extui %18 : vector<8x8x1xi1> to vector<8x8x1xi32>
      %20 = arith.sitofp %19 : vector<8x8x1xi32> to vector<8x8x1xf32>
      %c0_8 = arith.constant 0 : index
      %c0_9 = arith.constant 0 : index
      %21 = vector.load %arg8[%c0_8, %c0_9] : memref<8x384xf32, #tpu.memory_space<vmem>>, vector<8x384xf32>
      %22 = vector.broadcast %20 : vector<8x8x1xf32> to vector<8x8x384xf32>
      %23 = arith.mulf %11, %22 : vector<8x8x384xf32>
      %cst = arith.constant dense<0.000000e+00> : vector<8x384xf32>
      %24 = vector.multi_reduction <add>, %23, %cst [1] : vector<8x8x384xf32> to vector<8x384xf32>
      %25 = arith.addf %21, %24 : vector<8x384xf32>
      %c0_10 = arith.constant 0 : index
      %c0_11 = arith.constant 0 : index
      %26 = vector.load %arg8[%c0_10, %c0_11] : memref<8x384xf32, #tpu.memory_space<vmem>>, vector<8x384xf32>
      tpu.vector_store %arg8[%c0_10, %c0_11], %25 {strides = array<i32>} : memref<8x384xf32, #tpu.memory_space<vmem>>, vector<8x384xf32>,
    } else {
    }
    %c1_i32 = arith.constant 1 : i32
    %8 = arith.cmpi eq, %arg1, %c1_i32 : i32
    %9 = arith.extui %8 : i1 to i32
    %c0_i32_2 = arith.constant 0 : i32
    %10 = arith.cmpi ne, %9, %c0_i32_2 : i32
    scf.if %10 {
      %c0 = arith.constant 0 : index
      %c0_3 = arith.constant 0 : index
      %11 = vector.load %arg8[%c0, %c0_3] : memref<8x384xf32, #tpu.memory_space<vmem>>, vector<8x384xf32>
      %c192_i32 = arith.constant 192 : i32
      %12 = tpu.dynamic_rotate %11 by %c192_i32 dim 1 : vector<8x384xf32>, i32 -> vector<8x384xf32>
      %c0_4 = arith.constant 0 : index
      %c0_5 = arith.constant 0 : index
      %13 = vector.load %arg5[%c0_4, %c0_5] : memref<8x384xf32, #tpu.memory_space<vmem>>, vector<8x384xf32>
      %14 = arith.mulf %11, %13 : vector<8x384xf32>
      %c0_6 = arith.constant 0 : index
      %c0_7 = arith.constant 0 : index
      %15 = vector.load %arg6[%c0_6, %c0_7] : memref<8x384xf32, #tpu.memory_space<vmem>>, vector<8x384xf32>
      %16 = arith.mulf %12, %15 : vector<8x384xf32>
      %17 = arith.addf %14, %16 : vector<8x384xf32>
      %18 = arith.mulf %17, %17 : vector<8x384xf32>
      %cst = arith.constant dense<0.000000e+00> : vector<8xf32>
      %19 = vector.multi_reduction <add>, %18, %cst [1] : vector<8x384xf32> to vector<8xf32>
      %20 = vector.shape_cast %19 : vector<8xf32> to vector<8x1xf32>
      %cst_8 = arith.constant 1.000000e-24 : f32
      %21 = vector.broadcast %cst_8 : f32 to vector<8x1xf32>
      %22 = arith.maximumf %20, %21 : vector<8x1xf32>
      %23 = math.rsqrt %22 : vector<8x1xf32>
      %24 = vector.broadcast %23 : vector<8x1xf32> to vector<8x384xf32>
      %25 = arith.mulf %17, %24 : vector<8x384xf32>
      %c0_9 = arith.constant 0 : index
      %c0_10 = arith.constant 0 : index
      %26 = vector.load %arg7[%c0_9, %c0_10] : memref<8x384xf32, #tpu.memory_space<vmem>>, vector<8x384xf32>
      tpu.vector_store %arg7[%c0_9, %c0_10], %25 {strides = array<i32>} : memref<8x384xf32, #tpu.memory_space<vmem>>, vector<8x384xf32>,
    } else {
    }
    return
  }
  func.func @transform_0(%arg0: i32, %arg1: i32, %arg2: memref<2xi32, #tpu.memory_space<smem>>) -> (i32, i32, i32) {
    %0 = arith.index_cast %arg0 : i32 to index
    %1 = memref.load %arg2[%0] : memref<2xi32, #tpu.memory_space<smem>>
    %c1_i32 = arith.constant 1 : i32
    %2 = arith.subi %1, %c1_i32 : i32
    %3 = arith.minsi %arg1, %2 : i32
    %c0_i32 = arith.constant 0 : i32
    %c0_i32_0 = arith.constant 0 : i32
    return %arg0, %3, %c0_i32 : i32, i32, i32
  }
  func.func @transform_1(%arg0: i32, %arg1: i32, %arg2: memref<2xi32, #tpu.memory_space<smem>>) -> (i32, i32, i32) {
    %c0_i32 = arith.constant 0 : i32
    %c0_i32_0 = arith.constant 0 : i32
    %c0_i32_1 = arith.constant 0 : i32
    return %arg0, %c0_i32, %c0_i32_0 : i32, i32, i32
  }
  func.func @transform_2(%arg0: i32, %arg1: i32, %arg2: memref<2xi32, #tpu.memory_space<smem>>) -> (i32, i32) {
    %c0_i32 = arith.constant 0 : i32
    %c0_i32_0 = arith.constant 0 : i32
    return %arg0, %c0_i32 : i32, i32
  }
  func.func @transform_3(%arg0: i32, %arg1: i32, %arg2: memref<2xi32, #tpu.memory_space<smem>>) -> (i32, i32) {
    %c0_i32 = arith.constant 0 : i32
    %c0_i32_0 = arith.constant 0 : i32
    return %arg0, %c0_i32 : i32, i32
  }
  func.func @transform_4(%arg0: i32, %arg1: i32, %arg2: memref<2xi32, #tpu.memory_space<smem>>) -> (i32, i32) {
    %c0_i32 = arith.constant 0 : i32
    %c0_i32_0 = arith.constant 0 : i32
    return %arg0, %c0_i32 : i32, i32
  }
}

</mosaic_0001>

<llo_original>
// kernel: tpu_custom_call.1
$region0: #{tpu_custom_call.1}
  #allocation0 [shape = 'u32[]', space=smem, size = 0x4, offset = 0x4, fixed_abs, tag = 'smem constant byte address 0x4 - core index']
  #allocation1 [shape = 'u32[144,128]{1,0:T(1,128)}', space=vmem, size = 0x12000, scoped, tag = 'internal scratch']
  #allocation2 [shape = 'f32[8,384]{1,0:T(8,128)}', space=vmem, size = 0x3000, scoped, tag = 'scratch operand']
  #allocation3 [shape = 's32[1]{0}', space=sflag, size = 0x4, scoped, tag = 'scoped memory for tpu_custom_call.1']
  #allocation4 [shape = 'u8[512]{0}', space=smem, size = 0x200, scoped, tag = 'prefetched SMEM operand 0']
  %s0 = inlined_call_operand.vmem [shape: s32[2], index: 0, kind: input, shape index: {}]
  %s1 = inlined_call_operand.hbm [shape: f32[16,16,384], index: 1, kind: input, shape index: {}]
  %s2 = inlined_call_operand.vmem [shape: s32[16,1,1], index: 2, kind: input, shape index: {}]
  %s3 = inlined_call_operand.hbm [shape: f32[16,384], index: 3, kind: input, shape index: {}]
  %s4 = inlined_call_operand.hbm [shape: f32[16,384], index: 4, kind: input, shape index: {}]
  %s5 = inlined_call_operand.hbm [shape: f32[16,384], index: 5, kind: output, shape index: {}]
  %s6 = sld [smem:[#allocation0]]
  $region73: #{tpu_custom_call.1} parent=0
    _
  %s8 = ssub.s32 1, %s6
  %s9 = scalar_select 0, %s8, %s6
  %s10 = sshll.u32 %s0, 4
  %s11 = int_to_ptr.vmem [resolvable:$true] %s10
  %13 = dma.vmem_to_smem %s11, 16, [#allocation4], [#allocation3]
  %14 = dma.done [#allocation3], 16
  %15 = sfence
  $region1: #{tpu_custom_call.1} parent=0
    #allocation5 [shape = 'u8[196608]{0}', space=vmem, size = 0x30000, scoped, tag = 'input window, operand 1']
    #allocation6 [shape = 's32[2]{0}', space=sflag, size = 0x8, scoped, tag = 'scoped memory for tpu_custom_call.1']
    #allocation7 [shape = 's32[2]{0}', space=sflag, size = 0x8, scoped, tag = 'scoped memory for tpu_custom_call.1']
    #allocation8 [shape = 'u8[24576]{0}', space=vmem, size = 0x6000, scoped, tag = 'input window, operand 3']
    #allocation9 [shape = 's32[2]{0}', space=sflag, size = 0x8, scoped, tag = 'scoped memory for tpu_custom_call.1']
    #allocation10 [shape = 'u8[24576]{0}', space=vmem, size = 0x6000, scoped, tag = 'input window, operand 4']
    #allocation11 [shape = 'u8[24576]{0}', space=vmem, size = 0x6000, scoped, tag = 'output window, operand 0']
    %16 = vsyncpa [#allocation6], 0
    %s17 = scalar_lea.sflag [#allocation6], 1
    %18 = vsyncpa %s17, 0
    %19 = vsyncpa [#allocation9], 0
    %s20 = scalar_lea.sflag [#allocation9], 1
    %21 = vsyncpa %s20, 0
    %22 = vsyncpa [#allocation7], 0
    %s23 = scalar_lea.sflag [#allocation7], 1
    %24 = vsyncpa %s23, 0
    loop: start=0, step=1, limit=6
    $region2: #{tpu_custom_call.1} parent=1 // loop_pre_header
      _
    $region3: #{tpu_custom_call.1} parent=1 // loop_header
      %s26 = sphi 0, %s30
      %p27 = scmp.ge.s32.totalorder %s26, 6
      %s33 = sphi 0, %s45
      %s34 = sphi 0, %s41
      %s35 = sphi 0, %s33
      %s36 = sphi 0, %s34
      %s37 = sphi 0, %s35
      %s38 = sphi 0, %s36
      %s58 = sphi 0, %s60
      %s61 = sphi 0, %s58
      %s62 = sphi 0, %s61
      %s78 = sphi 0, %s62
      %s84 = sphi 0, %s86
      %s87 = sphi 0, %s84
      %s88 = sphi 0, %s87
      %s104 = sphi 0, %s88
      %s110 = sphi 0, %s112
      %s113 = sphi 0, %s110
      %s114 = sphi 0, %s113
      %s130 = sphi 0, %s114
      %s136 = sphi 0, %s138
      %s139 = sphi 0, %s136
      %s140 = sphi 0, %s139
      %s156 = sphi 0, %s140
      %s162 = sphi 0, %s164
      %s165 = sphi 0, %s162
      %s166 = sphi 0, %s165
      %s182 = sphi 0, %s166
    $region4: #{tpu_custom_call.1} parent=1 // loop_header_branch
      %29 = sbr.rel (%p27) target = $region8
    $region5: #{tpu_custom_call.1} parent=1 // loop_body
      %s31 = ssub.s32 %s26, 1
      %s32 = ssub.s32 %s26, 2
      %s39 = sadd.s32 1, %s34
      %p40 = scmp.ge.s32.totalorder %s39, 2
      %s41 = scalar_select %p40, 0, %s39
      %s42 = sadd.s32 1, %s33
      %s43 = scalar_select %p40, %s42, %s33
      %p44 = scmp.ge.s32.totalorder %s43, 2
      %s45 = scalar_select %p44, 0, %s43
      %s46 = sld [smem:[#allocation4 + %s33]]
      %s47 = ssub.s32 %s46, 1
      %p48 = scmp.lt.s32.totalorder %s34, %s47
      %s49 = scalar_select %p48, %s34, %s47
      %s50 = sld [smem:[#allocation4 + %s45]]
      %s51 = ssub.s32 %s50, 1
      %p52 = scmp.lt.s32.totalorder %s41, %s51
      %s53 = scalar_select %p52, %s41, %s51
      %s54 = ssub.s32 %s33, %s45
      %s55 = ssub.s32 %s49, %s53
      %s56 = sor.u32 %s54, %s55
      %p57 = scmp.eq.s32.totalorder %s56, 0
      %s59 = sadd.s32 %s58, 1
      %s60 = scalar_select %p57, %s58, %s59
      %p63 = pneg %p57
      %p64 = scmp.eq.s32.totalorder %s26, 3
      %p65 = por %p63, %p64
      %p66 = scmp.ne.s32.totalorder %s58, %s61
      %p67 = scmp.eq.s32.totalorder %s26, 0
      %p68 = por %p66, %p67
      %p69 = scmp.ne.s32.totalorder %s58, %s61
      %p70 = scmp.eq.s32.totalorder %s31, 3
      %p71 = por %p69, %p70
      %p72 = scmp.ne.s32.totalorder %s61, %s62
      %p73 = scmp.eq.s32.totalorder %s31, 0
      %p74 = por %p72, %p73
      %p75 = scmp.ne.s32.totalorder %s61, %s62
      %p76 = scmp.eq.s32.totalorder %s32, 3
      %p77 = por %p75, %p76
      %p79 = scmp.ne.s32.totalorder %s62, %s78
      %p80 = scmp.eq.s32.totalorder %s32, 0
      %p81 = por %p79, %p80
      %s82 = ssub.s32 %s33, %s45
      %p83 = scmp.eq.s32.totalorder %s82, 0
      %s85 = sadd.s32 %s84, 1
      %s86 = scalar_select %p83, %s84, %s85
      %p89 = pneg %p83
      %p90 = scmp.eq.s32.totalorder %s26, 3
      %p91 = por %p89, %p90
      %p92 = scmp.ne.s32.totalorder %s84, %s87
      %p93 = scmp.eq.s32.totalorder %s26, 0
      %p94 = por %p92, %p93
      %p95 = scmp.ne.s32.totalorder %s84, %s87
      %p96 = scmp.eq.s32.totalorder %s31, 3
      %p97 = por %p95, %p96
      %p98 = scmp.ne.s32.totalorder %s87, %s88
      %p99 = scmp.eq.s32.totalorder %s31, 0
      %p100 = por %p98, %p99
      %p101 = scmp.ne.s32.totalorder %s87, %s88
      %p102 = scmp.eq.s32.totalorder %s32, 3
      %p103 = por %p101, %p102
      %p105 = scmp.ne.s32.totalorder %s88, %s104
      %p106 = scmp.eq.s32.totalorder %s32, 0
      %p107 = por %p105, %p106
      %s108 = ssub.s32 %s33, %s45
      %p109 = scmp.eq.s32.totalorder %s108, 0
      %s111 = sadd.s32 %s110, 1
      %s112 = scalar_select %p109, %s110, %s111
      %p115 = pneg %p109
      %p116 = scmp.eq.s32.totalorder %s26, 3
      %p117 = por %p115, %p116
      %p118 = scmp.ne.s32.totalorder %s110, %s113
      %p119 = scmp.eq.s32.totalorder %s26, 0
      %p120 = por %p118, %p119
      %p121 = scmp.ne.s32.totalorder %s110, %s113
      %p122 = scmp.eq.s32.totalorder %s31, 3
      %p123 = por %p121, %p122
      %p124 = scmp.ne.s32.totalorder %s113, %s114
      %p125 = scmp.eq.s32.totalorder %s31, 0
      %p126 = por %p124, %p125
      %p127 = scmp.ne.s32.totalorder %s113, %s114
      %p128 = scmp.eq.s32.totalorder %s32, 3
      %p129 = por %p127, %p128
      %p131 = scmp.ne.s32.totalorder %s114, %s130
      %p132 = scmp.eq.s32.totalorder %s32, 0
      %p133 = por %p131, %p132
      %s134 = ssub.s32 %s33, %s45
      %p135 = scmp.eq.s32.totalorder %s134, 0
      %s137 = sadd.s32 %s136, 1
      %s138 = scalar_select %p135, %s136, %s137
      %p141 = pneg %p135
      %p142 = scmp.eq.s32.totalorder %s26, 3
      %p143 = por %p141, %p142
      %p144 = scmp.ne.s32.totalorder %s136, %s139
      %p145 = scmp.eq.s32.totalorder %s26, 0
      %p146 = por %p144, %p145
      %p147 = scmp.ne.s32.totalorder %s136, %s139
      %p148 = scmp.eq.s32.totalorder %s31, 3
      %p149 = por %p147, %p148
      %p150 = scmp.ne.s32.totalorder %s139, %s140
      %p151 = scmp.eq.s32.totalorder %s31, 0
      %p152 = por %p150, %p151
      %p153 = scmp.ne.s32.totalorder %s139, %s140
      %p154 = scmp.eq.s32.totalorder %s32, 3
      %p155 = por %p153, %p154
      %p157 = scmp.ne.s32.totalorder %s140, %s156
      %p158 = scmp.eq.s32.totalorder %s32, 0
      %p159 = por %p157, %p158
      %s160 = ssub.s32 %s33, %s45
      %p161 = scmp.eq.s32.totalorder %s160, 0
      %s163 = sadd.s32 %s162, 1
      %s164 = scalar_select %p161, %s162, %s163
      %p167 = pneg %p161
      %p168 = scmp.eq.s32.totalorder %s26, 3
      %p169 = por %p167, %p168
      %p170 = scmp.ne.s32.totalorder %s162, %s165
      %p171 = scmp.eq.s32.totalorder %s26, 0
      %p172 = por %p170, %p171
      %p173 = scmp.ne.s32.totalorder %s162, %s165
      %p174 = scmp.eq.s32.totalorder %s31, 3
      %p175 = por %p173, %p174
      %p176 = scmp.ne.s32.totalorder %s165, %s166
      %p177 = scmp.eq.s32.totalorder %s31, 0
      %p178 = por %p176, %p177
      %p179 = scmp.ne.s32.totalorder %s165, %s166
      %p180 = scmp.eq.s32.totalorder %s32, 3
      %p181 = por %p179, %p180
      %p183 = scmp.ne.s32.totalorder %s166, %s182
      %p184 = scmp.eq.s32.totalorder %s32, 0
      %p185 = por %p183, %p184
      %p186 = scmp.le.s32.totalorder 1, %s26
      %p187 = scmp.lt.s32.totalorder %s26, 5
      %p188 = pnand %p186, %p187
      %p189 = pneg %p188
      // Predicated region
      $region9: #{tpu_custom_call.1} parent=5 // pred_check
        _
      $region10: #{tpu_custom_call.1} parent=5 // pred_check_branch
        %191 = sbr.rel (%p188) target = $region12
      $region11: #{tpu_custom_call.1} parent=5 // pred_region
        %s192 = ssub.s32 %s26, 1
      $region12: #{tpu_custom_call.1} parent=5 // pred_fallthru
        _
      %p193 = scmp.lt.s32.totalorder %s26, 4
      // Predicated region
      $region13: #{tpu_custom_call.1} parent=5 // pred_check
        %p194 = pneg %p193
      $region14: #{tpu_custom_call.1} parent=5 // pred_check_branch
        %196 = sbr.rel (%p194) target = $region16
      $region15: #{tpu_custom_call.1} parent=5 // pred_region
        // Predicated region
        $region17: #{tpu_custom_call.1} parent=15 // pred_check
          %p197 = pneg %p68
        $region18: #{tpu_custom_call.1} parent=15 // pred_check_branch
          %199 = sbr.rel (%p197) target = $region20
        $region19: #{tpu_custom_call.1} parent=15 // pred_region
          %s200 = sand.u32 %s58, 1
          %s201 = scalar_lea.sflag [#allocation6], %s200
          %s202 = sand.u32 %s58, 1
          %s203 = smul.addr %s202, 192
          %s204 = scalar_lea.vmem [#allocation5], %s203
          %s205 = sld [smem:[#allocation4 + %s33]]
          %s206 = ssub.s32 %s205, 1
          %p207 = scmp.lt.s32.totalorder %s34, %s206
          %s208 = scalar_select %p207, %s34, %s206
          %s209 = smul.u32 8, %s33
          %s211 = ssub.s32 3072, 3072
          %212 = vsyncadd %s201, %s211
          %s213 = smul.addr %s208, 3
          %s214 = smul.addr %s209, 6
          %s215 = sadd.s32 %s213, %s214
          %s216 = smul.addr %s215, 128
          %s217 = scalar_lea.hbm %s1, %s216
          %s218 = sshll.u32 %s204, 4
          %s219 = int_to_ptr.vmem [resolvable:$true] %s218
          %224 = dma.hbm_to_vmem [thread:$0]  %s217, 3072, %s219, %s201, 768, 384, 24
        $region20: #{tpu_custom_call.1} parent=15 // pred_fallthru
          _
        // Predicated region
        $region21: #{tpu_custom_call.1} parent=15 // pred_check
          %p225 = pneg %p94
        $region22: #{tpu_custom_call.1} parent=15 // pred_check_branch
          %227 = sbr.rel (%p225) target = $region24
        $region23: #{tpu_custom_call.1} parent=15 // pred_region
          %s228 = smul.u32 8, %s33
          %p229 = scmp.lt.s32.totalorder %s228, 15
          %s230 = scalar_select %p229, %s228, 15
          %s231 = scalar_lea.vmem %s2, %s230
          %s232 = smul.u32 8, %s33
        $region24: #{tpu_custom_call.1} parent=15 // pred_fallthru
          _
        // Predicated region
        $region25: #{tpu_custom_call.1} parent=15 // pred_check
          %p233 = pneg %p120
        $region26: #{tpu_custom_call.1} parent=15 // pred_check_branch
          %235 = sbr.rel (%p233) target = $region28
        $region27: #{tpu_custom_call.1} parent=15 // pred_region
          %s236 = sand.u32 %s26, 1
          %s237 = scalar_lea.sflag [#allocation9], %s236
          %s238 = sand.u32 %s110, 1
          %s239 = smul.addr %s238, 24
          %s240 = scalar_lea.vmem [#allocation8], %s239
          %s242 = ssub.s32 384, 384
          %243 = vsyncadd %s237, %s242
          %s244 = smul.addr %s33, 3
          %s245 = smul.addr %s244, 128
          %s246 = scalar_lea.hbm %s3, %s245
          %s248 = sshll.u32 %s240, 4
          %s249 = int_to_ptr.vmem [resolvable:$true] %s248
          %251 = dma.hbm_to_vmem [thread:$0]  %s246, 384, %s249, %s237
        $region28: #{tpu_custom_call.1} parent=15 // pred_fallthru
          _
        // Predicated region
        $region29: #{tpu_custom_call.1} parent=15 // pred_check
          %p252 = pneg %p146
        $region30: #{tpu_custom_call.1} parent=15 // pred_check_branch
          %254 = sbr.rel (%p252) target = $region32
        $region31: #{tpu_custom_call.1} parent=15 // pred_region
          %s255 = sand.u32 %s26, 1
          %s256 = scalar_lea.sflag [#allocation9], %s255
          %s257 = sand.u32 %s136, 1
          %s258 = smul.addr %s257, 24
          %s259 = scalar_lea.vmem [#allocation10], %s258
          %s261 = ssub.s32 384, 384
          %262 = vsyncadd %s256, %s261
          %s263 = smul.addr %s33, 3
          %s264 = smul.addr %s263, 128
          %s265 = scalar_lea.hbm %s4, %s264
          %s267 = sshll.u32 %s259, 4
          %s268 = int_to_ptr.vmem [resolvable:$true] %s267
          %270 = dma.hbm_to_vmem [thread:$0]  %s265, 384, %s268, %s256
        $region32: #{tpu_custom_call.1} parent=15 // pred_fallthru
          _
      $region16: #{tpu_custom_call.1} parent=5 // pred_fallthru
        _
      %p271 = scmp.le.s32.totalorder 1, %s26
      %p272 = scmp.lt.s32.totalorder %s26, 5
      %p273 = pnand %p271, %p272
      %p274 = pneg %p273
      // Predicated region
      $region33: #{tpu_custom_call.1} parent=5 // pred_check
        _
      $region34: #{tpu_custom_call.1} parent=5 // pred_check_branch
        %276 = sbr.rel (%p273) target = $region36
      $region35: #{tpu_custom_call.1} parent=5 // pred_region
        %s277 = ssub.s32 %s26, 1
        %s278 = sand.u32 %s61, 1
        %s279 = scalar_lea.sflag [#allocation6], %s278
        %s280 = sand.u32 %s61, 1
        %s281 = smul.addr %s280, 192
        %s282 = scalar_lea.vmem [#allocation5], %s281
        // Predicated region
        $region37: #{tpu_custom_call.1} parent=35 // pred_check
          %p283 = pneg %p74
        $region38: #{tpu_custom_call.1} parent=35 // pred_check_branch
          %285 = sbr.rel (%p283) target = $region40
        $region39: #{tpu_custom_call.1} parent=35 // pred_region
          %286 = dma.done %s279, 3072
        $region40: #{tpu_custom_call.1} parent=35 // pred_fallthru
          _
        %s287 = sand.u32 %s31, 1
        %s288 = scalar_lea.sflag [#allocation9], %s287
        %s289 = sand.u32 %s113, 1
        %s290 = smul.addr %s289, 24
        %s291 = scalar_lea.vmem [#allocation8], %s290
        // Predicated region
        $region41: #{tpu_custom_call.1} parent=35 // pred_check
          %p292 = pneg %p126
        $region42: #{tpu_custom_call.1} parent=35 // pred_check_branch
          %294 = sbr.rel (%p292) target = $region44
        $region43: #{tpu_custom_call.1} parent=35 // pred_region
          %295 = dma.done %s288, 384
        $region44: #{tpu_custom_call.1} parent=35 // pred_fallthru
          _
        %s296 = sand.u32 %s31, 1
        %s297 = scalar_lea.sflag [#allocation9], %s296
        %s298 = sand.u32 %s139, 1
        %s299 = smul.addr %s298, 24
        %s300 = scalar_lea.vmem [#allocation10], %s299
        // Predicated region
        $region45: #{tpu_custom_call.1} parent=35 // pred_check
          %p301 = pneg %p152
        $region46: #{tpu_custom_call.1} parent=35 // pred_check_branch
          %303 = sbr.rel (%p301) target = $region48
        $region47: #{tpu_custom_call.1} parent=35 // pred_region
          %304 = dma.done %s297, 384
        $region48: #{tpu_custom_call.1} parent=35 // pred_fallthru
          _
        %s305 = sand.u32 %s61, 1
        %s306 = scalar_lea.sflag [#allocation6], %s305
        %s307 = sand.u32 %s61, 1
        %s308 = smul.addr %s307, 192
        %s309 = scalar_lea.vmem [#allocation5], %s308
        %p310 = pneg %p74
        %p311 = pneg %p71
        %s312 = smul.u32 8, %s35
        %p313 = scmp.lt.s32.totalorder %s312, 15
        %s314 = scalar_select %p313, %s312, 15
        %s315 = scalar_lea.vmem %s2, %s314
        %p316 = pneg %p100
        %p317 = pneg %p97
        %s318 = sand.u32 %s31, 1
        %s319 = scalar_lea.sflag [#allocation9], %s318
        %s320 = sand.u32 %s113, 1
        %s321 = smul.addr %s320, 24
        %s322 = scalar_lea.vmem [#allocation8], %s321
        %p323 = pneg %p126
        %p324 = pneg %p123
        %s325 = sand.u32 %s31, 1
        %s326 = scalar_lea.sflag [#allocation9], %s325
        %s327 = sand.u32 %s139, 1
        %s328 = smul.addr %s327, 24
        %s329 = scalar_lea.vmem [#allocation10], %s328
        %p330 = pneg %p152
        %p331 = pneg %p149
        %p332 = pneg %p178
        %p333 = pneg %p175
        %s334 = sand.u32 %s165, 1
        %s335 = scalar_lea.sflag [#allocation7], %s334
        %s336 = sand.u32 %s165, 1
        %s337 = smul.addr %s336, 24
        %s338 = scalar_lea.vmem [#allocation11], %s337
        %s339 = sld [smem:[#allocation4 + %s35]]
        %s340 = ssub.s32 %s339, 1
        %p341 = scmp.lt.s32.totalorder %s36, %s340
        %s342 = scalar_select %p341, %s36, %s340
        %s343 = smul.u32 8, %s35
        %s344 = smul.u32 8, %s35
        %p345 = scmp.lt.s32.totalorder %s344, 15
        %s346 = scalar_select %p345, %s344, 15
        %s347 = scalar_lea.vmem %s2, %s346
        %s348 = smul.u32 8, %s35
        %p349 = scmp.eq.s32.totalorder %s36, 0
        // Predicated region
        $region49: #{tpu_custom_call.1} parent=35 // pred_check
          %p350 = pneg %p349
        $region50: #{tpu_custom_call.1} parent=35 // pred_check_branch
          %352 = sbr.rel (%p350) target = $region52
        $region51: #{tpu_custom_call.1} parent=35 // pred_region
          %353 = vst [vmem:[#allocation2] sm:$0xff] 0.0
          %354 = vst [vmem:[#allocation2 + $0x8] sm:$0xff] 0.0
          %355 = vst [vmem:[#allocation2 + $0x10] sm:$0xff] 0.0
        $region52: #{tpu_custom_call.1} parent=35 // pred_fallthru
          _
        %s356 = sld [smem:[#allocation4 + %s35]]
        %p357 = scmp.lt.s32.totalorder %s36, %s356
        // Predicated region
        $region53: #{tpu_custom_call.1} parent=35 // pred_check
          %p358 = pneg %p357
        $region54: #{tpu_custom_call.1} parent=35 // pred_check_branch
          %360 = sbr.rel (%p358) target = $region56
        $region55: #{tpu_custom_call.1} parent=35 // pred_region
          %v361 = vld [vmem:[%s282] sm:$0xff]
          %v362 = vld [vmem:[%s282 + $0x8] sm:$0xff]
          %v363 = vld [vmem:[%s282 + $0x10] sm:$0xff]
          %v364 = vld [vmem:[%s282 + $0x18] sm:$0xff]
          %v365 = vld [vmem:[%s282 + $0x20] sm:$0xff]
          %v366 = vld [vmem:[%s282 + $0x28] sm:$0xff]
          %v367 = vld [vmem:[%s282 + $0x30] sm:$0xff]
          %v368 = vld [vmem:[%s282 + $0x38] sm:$0xff]
          %v369 = vld [vmem:[%s282 + $0x40] sm:$0xff]
          %v370 = vld [vmem:[%s282 + $0x48] sm:$0xff]
          %v371 = vld [vmem:[%s282 + $0x50] sm:$0xff]
          %v372 = vld [vmem:[%s282 + $0x58] sm:$0xff]
          %v373 = vld [vmem:[%s282 + $0x60] sm:$0xff]
          %v374 = vld [vmem:[%s282 + $0x68] sm:$0xff]
          %v375 = vld [vmem:[%s282 + $0x70] sm:$0xff]
          %v376 = vld [vmem:[%s282 + $0x78] sm:$0xff]
          %v377 = vld [vmem:[%s282 + $0x80] sm:$0xff]
          %v378 = vld [vmem:[%s282 + $0x88] sm:$0xff]
          %v379 = vld [vmem:[%s282 + $0x90] sm:$0xff]
          %v380 = vld [vmem:[%s282 + $0x98] sm:$0xff]
          %v381 = vld [vmem:[%s282 + $0xa0] sm:$0xff]
          %v382 = vld [vmem:[%s282 + $0xa8] sm:$0xff]
          %v383 = vld [vmem:[%s282 + $0xb0] sm:$0xff]
          %v384 = vld [vmem:[%s282 + $0xb8] sm:$0xff]
          %s385 = smul.u32 %s36, 8
          %v386 = vlaneseq
          %v387 = vshrl.u32 %v386, 7
          %v388 = vstv %s385
          %v389 = vadd.s32 %v388, %v387
          %v390 = vld [vmem:[%s347] sm:$0x1]
          %v391 = vld [vmem:[%s347 + $0x1] sm:$0x1]
          %v392 = vld [vmem:[%s347 + $0x2] sm:$0x1]
          %v393 = vld [vmem:[%s347 + $0x3] sm:$0x1]
          %v394 = vld [vmem:[%s347 + $0x4] sm:$0x1]
          %v395 = vld [vmem:[%s347 + $0x5] sm:$0x1]
          %v396 = vld [vmem:[%s347 + $0x6] sm:$0x1]
          %v397 = vld [vmem:[%s347 + $0x7] sm:$0x1]
          %v398 = vlaneseq
          %v399 = vshrl.u32 %v398, 7
          %v400 = vsub.s32 0, %v399
          %v401 = vrot.slane %v390, %v400
          %v402 = vlaneseq
          %v403 = vshrl.u32 %v402, 7
          %v404 = vsub.s32 0, %v403
          %v405 = vrot.slane %v391, %v404
          %v406 = vlaneseq
          %v407 = vshrl.u32 %v406, 7
          %v408 = vsub.s32 0, %v407
          %v409 = vrot.slane %v392, %v408
          %v410 = vlaneseq
          %v411 = vshrl.u32 %v410, 7
          %v412 = vsub.s32 0, %v411
          %v413 = vrot.slane %v393, %v412
          %v414 = vlaneseq
          %v415 = vshrl.u32 %v414, 7
          %v416 = vsub.s32 0, %v415
          %v417 = vrot.slane %v394, %v416
          %v418 = vlaneseq
          %v419 = vshrl.u32 %v418, 7
          %v420 = vsub.s32 0, %v419
          %v421 = vrot.slane %v395, %v420
          %v422 = vlaneseq
          %v423 = vshrl.u32 %v422, 7
          %v424 = vsub.s32 0, %v423
          %v425 = vrot.slane %v396, %v424
          %v426 = vlaneseq
          %v427 = vshrl.u32 %v426, 7
          %v428 = vsub.s32 0, %v427
          %v429 = vrot.slane %v397, %v428
          %vm430 = vcmp.lt.s32.totalorder %v389, %v401
          %vm431 = vcmp.lt.s32.totalorder %v389, %v405
          %vm432 = vcmp.lt.s32.totalorder %v389, %v409
          %vm433 = vcmp.lt.s32.totalorder %v389, %v413
          %vm434 = vcmp.lt.s32.totalorder %v389, %v417
          %vm435 = vcmp.lt.s32.totalorder %v389, %v421
          %vm436 = vcmp.lt.s32.totalorder %v389, %v425
          %vm437 = vcmp.lt.s32.totalorder %v389, %v429
          %v438 = vsel %vm430, 1, 0
          %v439 = vsel %vm431, 1, 0
          %v440 = vsel %vm432, 1, 0
          %v441 = vsel %vm433, 1, 0
          %v442 = vsel %vm434, 1, 0
          %v443 = vsel %vm435, 1, 0
          %v444 = vsel %vm436, 1, 0
          %v445 = vsel %vm437, 1, 0
          %v446 = vcvt.s32.f32 %v438
          %v447 = vcvt.s32.f32 %v439
          %v448 = vcvt.s32.f32 %v440
          %v449 = vcvt.s32.f32 %v441
          %v450 = vcvt.s32.f32 %v442
          %v451 = vcvt.s32.f32 %v443
          %v452 = vcvt.s32.f32 %v444
          %v453 = vcvt.s32.f32 %v445
          %v454 = vld [vmem:[#allocation2] sm:$0xff]
          %v455 = vld [vmem:[#allocation2 + $0x8] sm:$0xff]
          %v456 = vld [vmem:[#allocation2 + $0x10] sm:$0xff]
          %458 = vset.pattern.permute.xlu0 0
          %459 = vperm.xlu0 %458, %v446
          %v460 = vpop.permute.xlu0 %459
          %463 = vset.pattern.permute.xlu0 0
          %464 = vperm.xlu0 %463, %v447
          %v465 = vpop.permute.xlu0 %464
          %468 = vset.pattern.permute.xlu0 0
          %469 = vperm.xlu0 %468, %v448
          %v470 = vpop.permute.xlu0 %469
          %473 = vset.pattern.permute.xlu0 0
          %474 = vperm.xlu0 %473, %v449
          %v475 = vpop.permute.xlu0 %474
          %478 = vset.pattern.permute.xlu0 0
          %479 = vperm.xlu0 %478, %v450
          %v480 = vpop.permute.xlu0 %479
          %483 = vset.pattern.permute.xlu0 0
          %484 = vperm.xlu0 %483, %v451
          %v485 = vpop.permute.xlu0 %484
          %488 = vset.pattern.permute.xlu0 0
          %489 = vperm.xlu0 %488, %v452
          %v490 = vpop.permute.xlu0 %489
          %493 = vset.pattern.permute.xlu0 0
          %494 = vperm.xlu0 %493, %v453
          %v495 = vpop.permute.xlu0 %494
          %v497 = vmul.f32 %v361, %v460
          %v498 = vmul.f32 %v362, %v460
          %v499 = vmul.f32 %v363, %v460
          %v500 = vmul.f32 %v364, %v465
          %v501 = vmul.f32 %v365, %v465
          %v502 = vmul.f32 %v366, %v465
          %v503 = vmul.f32 %v367, %v470
          %v504 = vmul.f32 %v368, %v470
          %v505 = vmul.f32 %v369, %v470
          %v506 = vmul.f32 %v370, %v475
          %v507 = vmul.f32 %v371, %v475
          %v508 = vmul.f32 %v372, %v475
          %v509 = vmul.f32 %v373, %v480
          %v510 = vmul.f32 %v374, %v480
          %v511 = vmul.f32 %v375, %v480
          %v512 = vmul.f32 %v376, %v485
          %v513 = vmul.f32 %v377, %v485
          %v514 = vmul.f32 %v378, %v485
          %v515 = vmul.f32 %v379, %v490
          %v516 = vmul.f32 %v380, %v490
          %v517 = vmul.f32 %v381, %v490
          %v518 = vmul.f32 %v382, %v495
          %v519 = vmul.f32 %v383, %v495
          %v520 = vmul.f32 %v384, %v495
          %v521 = vrot.slane %v497, 4
          %v522 = vadd.f32 %v497, %v521
          %v523 = vrot.slane %v522, 2
          %v524 = vadd.f32 %v522, %v523
          %v525 = vrot.slane %v524, 1
          %v526 = vadd.f32 %v524, %v525
          %v527 = vrot.slane %v498, 4
          %v528 = vadd.f32 %v498, %v527
          %v529 = vrot.slane %v528, 2
          %v530 = vadd.f32 %v528, %v529
          %v531 = vrot.slane %v530, 1
          %v532 = vadd.f32 %v530, %v531
          %v533 = vrot.slane %v499, 4
          %v534 = vadd.f32 %v499, %v533
          %v535 = vrot.slane %v534, 2
          %v536 = vadd.f32 %v534, %v535
          %v537 = vrot.slane %v536, 1
          %v538 = vadd.f32 %v536, %v537
          %v539 = vrot.slane %v500, 4
          %v540 = vadd.f32 %v500, %v539
          %v541 = vrot.slane %v540, 2
          %v542 = vadd.f32 %v540, %v541
          %v543 = vrot.slane %v542, 1
          %v544 = vadd.f32 %v542, %v543
          %v545 = vrot.slane %v501, 4
          %v546 = vadd.f32 %v501, %v545
          %v547 = vrot.slane %v546, 2
          %v548 = vadd.f32 %v546, %v547
          %v549 = vrot.slane %v548, 1
          %v550 = vadd.f32 %v548, %v549
          %v551 = vrot.slane %v502, 4
          %v552 = vadd.f32 %v502, %v551
          %v553 = vrot.slane %v552, 2
          %v554 = vadd.f32 %v552, %v553
          %v555 = vrot.slane %v554, 1
          %v556 = vadd.f32 %v554, %v555
          %v557 = vrot.slane %v503, 4
          %v558 = vadd.f32 %v503, %v557
          %v559 = vrot.slane %v558, 2
          %v560 = vadd.f32 %v558, %v559
          %v561 = vrot.slane %v560, 1
          %v562 = vadd.f32 %v560, %v561
          %v563 = vrot.slane %v504, 4
          %v564 = vadd.f32 %v504, %v563
          %v565 = vrot.slane %v564, 2
          %v566 = vadd.f32 %v564, %v565
          %v567 = vrot.slane %v566, 1
          %v568 = vadd.f32 %v566, %v567
          %v569 = vrot.slane %v505, 4
          %v570 = vadd.f32 %v505, %v569
          %v571 = vrot.slane %v570, 2
          %v572 = vadd.f32 %v570, %v571
          %v573 = vrot.slane %v572, 1
          %v574 = vadd.f32 %v572, %v573
          %v575 = vrot.slane %v506, 4
          %v576 = vadd.f32 %v506, %v575
          %v577 = vrot.slane %v576, 2
          %v578 = vadd.f32 %v576, %v577
          %v579 = vrot.slane %v578, 1
          %v580 = vadd.f32 %v578, %v579
          %v581 = vrot.slane %v507, 4
          %v582 = vadd.f32 %v507, %v581
          %v583 = vrot.slane %v582, 2
          %v584 = vadd.f32 %v582, %v583
          %v585 = vrot.slane %v584, 1
          %v586 = vadd.f32 %v584, %v585
          %v587 = vrot.slane %v508, 4
          %v588 = vadd.f32 %v508, %v587
          %v589 = vrot.slane %v588, 2
          %v590 = vadd.f32 %v588, %v589
          %v591 = vrot.slane %v590, 1
          %v592 = vadd.f32 %v590, %v591
          %v593 = vrot.slane %v509, 4
          %v594 = vadd.f32 %v509, %v593
          %v595 = vrot.slane %v594, 2
          %v596 = vadd.f32 %v594, %v595
          %v597 = vrot.slane %v596, 1
          %v598 = vadd.f32 %v596, %v597
          %v599 = vrot.slane %v510, 4
          %v600 = vadd.f32 %v510, %v599
          %v601 = vrot.slane %v600, 2
          %v602 = vadd.f32 %v600, %v601
          %v603 = vrot.slane %v602, 1
          %v604 = vadd.f32 %v602, %v603
          %v605 = vrot.slane %v511, 4
          %v606 = vadd.f32 %v511, %v605
          %v607 = vrot.slane %v606, 2
          %v608 = vadd.f32 %v606, %v607
          %v609 = vrot.slane %v608, 1
          %v610 = vadd.f32 %v608, %v609
          %v611 = vrot.slane %v512, 4
          %v612 = vadd.f32 %v512, %v611
          %v613 = vrot.slane %v612, 2
          %v614 = vadd.f32 %v612, %v613
          %v615 = vrot.slane %v614, 1
          %v616 = vadd.f32 %v614, %v615
          %v617 = vrot.slane %v513, 4
          %v618 = vadd.f32 %v513, %v617
          %v619 = vrot.slane %v618, 2
          %v620 = vadd.f32 %v618, %v619
          %v621 = vrot.slane %v620, 1
          %v622 = vadd.f32 %v620, %v621
          %v623 = vrot.slane %v514, 4
          %v624 = vadd.f32 %v514, %v623
          %v625 = vrot.slane %v624, 2
          %v626 = vadd.f32 %v624, %v625
          %v627 = vrot.slane %v626, 1
          %v628 = vadd.f32 %v626, %v627
          %v629 = vrot.slane %v515, 4
          %v630 = vadd.f32 %v515, %v629
          %v631 = vrot.slane %v630, 2
          %v632 = vadd.f32 %v630, %v631
          %v633 = vrot.slane %v632, 1
          %v634 = vadd.f32 %v632, %v633
          %v635 = vrot.slane %v516, 4
          %v636 = vadd.f32 %v516, %v635
          %v637 = vrot.slane %v636, 2
          %v638 = vadd.f32 %v636, %v637
          %v639 = vrot.slane %v638, 1
          %v640 = vadd.f32 %v638, %v639
          %v641 = vrot.slane %v517, 4
          %v642 = vadd.f32 %v517, %v641
          %v643 = vrot.slane %v642, 2
          %v644 = vadd.f32 %v642, %v643
          %v645 = vrot.slane %v644, 1
          %v646 = vadd.f32 %v644, %v645
          %v647 = vrot.slane %v518, 4
          %v648 = vadd.f32 %v518, %v647
          %v649 = vrot.slane %v648, 2
          %v650 = vadd.f32 %v648, %v649
          %v651 = vrot.slane %v650, 1
          %v652 = vadd.f32 %v650, %v651
          %v653 = vrot.slane %v519, 4
          %v654 = vadd.f32 %v519, %v653
          %v655 = vrot.slane %v654, 2
          %v656 = vadd.f32 %v654, %v655
          %v657 = vrot.slane %v656, 1
          %v658 = vadd.f32 %v656, %v657
          %v659 = vrot.slane %v520, 4
          %v660 = vadd.f32 %v520, %v659
          %v661 = vrot.slane %v660, 2
          %v662 = vadd.f32 %v660, %v661
          %v663 = vrot.slane %v662, 1
          %v664 = vadd.f32 %v662, %v663
          %vm689 = vcmask 1041409
          %v690 = vsel %vm689, %v544, %v526
          %vm691 = vcmask 1042434
          %v692 = vsel %vm691, %v562, %v690
          %vm693 = vcmask 1043459
          %v694 = vsel %vm693, %v580, %v692
          %vm695 = vcmask 1044484
          %v696 = vsel %vm695, %v598, %v694
          %vm697 = vcmask 1045509
          %v698 = vsel %vm697, %v616, %v696
          %vm699 = vcmask 1046534
          %v700 = vsel %vm699, %v634, %v698
          %vm701 = vcmask 1047559
          %v702 = vsel %vm701, %v652, %v700
          %v703 = vsel %vm689, %v550, %v532
          %v704 = vsel %vm691, %v568, %v703
          %v705 = vsel %vm693, %v586, %v704
          %v706 = vsel %vm695, %v604, %v705
          %v707 = vsel %vm697, %v622, %v706
          %v708 = vsel %vm699, %v640, %v707
          %v709 = vsel %vm701, %v658, %v708
          %v710 = vsel %vm689, %v556, %v538
          %v711 = vsel %vm691, %v574, %v710
          %v712 = vsel %vm693, %v592, %v711
          %v713 = vsel %vm695, %v610, %v712
          %v714 = vsel %vm697, %v628, %v713
          %v715 = vsel %vm699, %v646, %v714
          %v716 = vsel %vm701, %v664, %v715
          %v720 = vadd.f32 %v454, %v702
          %v721 = vadd.f32 %v455, %v709
          %v722 = vadd.f32 %v456, %v716
          %723 = vst [vmem:[#allocation2] sm:$0xff] %v720
          %724 = vst [vmem:[#allocation2 + $0x8] sm:$0xff] %v721
          %725 = vst [vmem:[#allocation2 + $0x10] sm:$0xff] %v722
        $region56: #{tpu_custom_call.1} parent=35 // pred_fallthru
          _
        %p726 = scmp.eq.s32.totalorder %s36, 1
        // Predicated region
        $region57: #{tpu_custom_call.1} parent=35 // pred_check
          %p727 = pneg %p726
        $region58: #{tpu_custom_call.1} parent=35 // pred_check_branch
          %729 = sbr.rel (%p727) target = $region60
        $region59: #{tpu_custom_call.1} parent=35 // pred_region
          %v730 = vld [vmem:[#allocation2] sm:$0xff]
          %v731 = vld [vmem:[#allocation2 + $0x8] sm:$0xff]
          %v732 = vld [vmem:[#allocation2 + $0x10] sm:$0xff]
          %733 = vrot.lane.b32.xlu0 %v730, 64
          %v734 = vpop.permute.xlu0 %733
          %735 = vrot.lane.b32.xlu0 %v731, 64
          %v736 = vpop.permute.xlu0 %735
          %737 = vrot.lane.b32.xlu0 %v732, 64
          %v738 = vpop.permute.xlu0 %737
          %v739 = vlaneseq
          %v740 = vand.u32 %v739, 127
          %vm741 = vcmp.lt.s32.totalorder %v740, 64
          %v742 = vsel %vm741, %v736, %v738
          %v743 = vsel %vm741, %v734, %v736
          %v744 = vsel %vm741, %v738, %v734
          %v745 = vld [vmem:[%s291] sm:$0xff]
          %v746 = vld [vmem:[%s291 + $0x8] sm:$0xff]
          %v747 = vld [vmem:[%s291 + $0x10] sm:$0xff]
          %v748 = vmul.f32 %v730, %v745
          %v749 = vmul.f32 %v731, %v746
          %v750 = vmul.f32 %v732, %v747
          %v751 = vld [vmem:[%s300] sm:$0xff]
          %v752 = vld [vmem:[%s300 + $0x8] sm:$0xff]
          %v753 = vld [vmem:[%s300 + $0x10] sm:$0xff]
          %v754 = vmul.f32 %v742, %v751
          %v755 = vmul.f32 %v744, %v752
          %v756 = vmul.f32 %v743, %v753
          %v757 = vadd.f32 %v748, %v754
          %v758 = vadd.f32 %v749, %v755
          %v759 = vadd.f32 %v750, %v756
          %v760 = vmul.f32 %v757, %v757
          %v761 = vmul.f32 %v758, %v758
          %v762 = vmul.f32 %v759, %v759
          %v763 = vadd.f32 %v760, %v761
          %v764 = vadd.f32 %v763, %v762
          %765 = vadd.xlane.f32.xlu0 %v764
          %v766 = vpop.xlane.xlu0 %765
          %v767 = vmax.f32 %v766, 1e-24
          %v768 = vrsqrt.pop %v767
          %v769 = vmul.f32 %v757, %v768
          %v770 = vmul.f32 %v758, %v768
          %v771 = vmul.f32 %v759, %v768
          %772 = vst [vmem:[%s338] sm:$0xff] %v769
          %773 = vst [vmem:[%s338 + $0x8] sm:$0xff] %v770
          %774 = vst [vmem:[%s338 + $0x10] sm:$0xff] %v771
        $region60: #{tpu_custom_call.1} parent=35 // pred_fallthru
          _
        %s775 = sand.u32 %s165, 1
        %s776 = scalar_lea.sflag [#allocation7], %s775
        %s777 = sand.u32 %s165, 1
        %s778 = smul.addr %s777, 24
        %s779 = scalar_lea.vmem [#allocation11], %s778
        // Predicated region
        $region61: #{tpu_custom_call.1} parent=35 // pred_check
          %p780 = pneg %p175
        $region62: #{tpu_custom_call.1} parent=35 // pred_check_branch
          %782 = sbr.rel (%p780) target = $region64
        $region63: #{tpu_custom_call.1} parent=35 // pred_region
          %s784 = ssub.s32 384, 384
          %785 = vsyncadd %s776, %s784
          %s786 = smul.addr %s35, 3
          %s787 = smul.addr %s786, 128
          %s788 = scalar_lea.hbm %s5, %s787
          %s790 = sshll.u32 %s779, 4
          %s791 = int_to_ptr.vmem [resolvable:$true] %s790
          %793 = dma.vmem_to_hbm [thread:$0]  %s791, 384, %s788, %s776
        $region64: #{tpu_custom_call.1} parent=35 // pred_fallthru
          _
      $region36: #{tpu_custom_call.1} parent=5 // pred_fallthru
        _
      %p794 = scmp.le.s32.totalorder 2, %s26
      // Predicated region
      $region65: #{tpu_custom_call.1} parent=5 // pred_check
        %p795 = pneg %p794
      $region66: #{tpu_custom_call.1} parent=5 // pred_check_branch
        %797 = sbr.rel (%p795) target = $region68
      $region67: #{tpu_custom_call.1} parent=5 // pred_region
        %s798 = ssub.s32 %s26, 2
        // Predicated region
        $region69: #{tpu_custom_call.1} parent=67 // pred_check
          %p799 = pneg %p181
        $region70: #{tpu_custom_call.1} parent=67 // pred_check_branch
          %801 = sbr.rel (%p799) target = $region72
        $region71: #{tpu_custom_call.1} parent=67 // pred_region
          %s802 = sand.u32 %s166, 1
          %s803 = scalar_lea.sflag [#allocation7], %s802
          %s804 = sand.u32 %s166, 1
          %s805 = smul.addr %s804, 24
          %s806 = scalar_lea.vmem [#allocation11], %s805
          %807 = dma.done %s803, 384
        $region72: #{tpu_custom_call.1} parent=67 // pred_fallthru
          _
      $region68: #{tpu_custom_call.1} parent=5 // pred_fallthru
        _
    $region6: #{tpu_custom_call.1} parent=1 // loop_footer
      %s30 = sadd.s32 1, %s26
    $region7: #{tpu_custom_call.1} parent=1 // loop_footer_branch
      %25 = sbr.rel target = $region3
    $region8: #{tpu_custom_call.1} parent=1 // loop_exit
      _
    %808 = vsyncpa [#allocation6], 1
    %s809 = scalar_lea.sflag [#allocation6], 1
    %810 = vsyncpa %s809, 1
    %811 = vsyncpa [#allocation9], 1
    %s812 = scalar_lea.sflag [#allocation9], 1
    %813 = vsyncpa %s812, 1
    %814 = vsyncpa [#allocation7], 1
    %s815 = scalar_lea.sflag [#allocation7], 1
    %816 = vsyncpa %s815, 1

</llo_original>
